<compile_context>
chip_gen: v6e
topology: v6e:2x2x1
jax: 0.10.0
libtpu: 0.0.40
codegen_flags: <defaults>
</compile_context>

<pallas_src>
import functools

import jax
import jax.numpy as jnp
from jax import lax
from jax.experimental import pallas as pl
from jax.experimental.pallas import tpu as pltpu

F32_MAX = float(jnp.finfo(jnp.float32).max)
MASK_VALUE = -F32_MAX            # reference (torch masked_fill) value
BIAS_DROP = -0.7 * F32_MAX       # additive bias for masked entries within a head
BIAS_XHEAD = -F32_MAX            # cross-head blocks: strictly below BIAS_DROP so a
                                 # fully-masked row stays uniform over its own head


# ----------------------------- fused Pallas kernel --------------------------

def _fused_attention_kernel(heads,
                            bias_ref, x_ref, ctx_ref, xmask_ref,
                            wq_ref, wk_ref, wvo_ref, bo_ref,
                            out_ref, attn_ref):
    """One batch element per grid step; all heads handled block-diagonally.

    Block shapes (H = heads, N = seq, dim = model dim, D = dim_head):
      bias_ref : (1, H*N, H*N) f32  additive mask (0 / BIAS_DROP / BIAS_XHEAD)
      x_ref    : (1, N, dim)   bf16 keys/values source
      ctx_ref  : (1, N, dim)   bf16 queries source
      xmask_ref: (H*N, H*dim)  bf16 head-selection 0/1 pattern
      wq_ref   : (dim, H*D)    bf16 query weights (scale folded in)
      wk_ref   : (H*dim, H*D)  bf16 block-diagonal key weights
      wvo_ref  : (H*dim, dim)  bf16 fused (Wv_h @ Wo_h) stacked along rows
      bo_ref   : (1, dim)      f32  output bias
      out_ref  : (1, N, dim)   f32
      attn_ref : (1, H*N, H*N) f32  block-diagonal attention probabilities
    """
    f32 = jnp.float32
    bf16 = jnp.bfloat16

    xb = x_ref[0]        # (N, dim) bf16
    cb = ctx_ref[0]      # (N, dim) bf16
    n = xb.shape[0]

    # Block-tiled, head-masked x: row-block h holds x in column-block h, 0 elsewhere.
    x_rep = jnp.concatenate([xb] * heads, axis=1)                    # (N, H*dim)
    x_blk = jnp.concatenate([x_rep] * heads, axis=0) * xmask_ref[...]  # (H*N, H*dim)

    # Queries: one lane-dense projection, then head-stack by row tiling.
    q_wide = jnp.dot(cb, wq_ref[...], preferred_element_type=f32).astype(bf16)  # (N, H*D)
    a_q = jnp.concatenate([q_wide] * heads, axis=0)                  # (H*N, H*D)

    # Keys: block-diagonal weight keeps heads separated -> single matmul.
    b_k = jnp.dot(x_blk, wk_ref[...], preferred_element_type=f32).astype(bf16)  # (H*N, H*D)

    # Scores for all heads at once; cross-head blocks are garbage but masked below.
    s = lax.dot_general(a_q, b_k, (((1,), (1,)), ((), ())),
                        preferred_element_type=f32)                  # (H*N, H*N)
    s = s + bias_ref[0]

    # Single masked softmax over all heads' rows (f32).
    m = jnp.max(s, axis=-1, keepdims=True)
    p = jnp.exp(s - m)
    denom = jnp.sum(p, axis=-1, keepdims=True)
    attn = p * pl.reciprocal(denom, approx=True)                     # (H*N, H*N)
    attn_ref[0] = attn            # one lane-dense store; off-head blocks are exact 0

    # Fused V @ Wo: u[h*N + j, :] = x[j] @ (Wv_h @ Wo_h)
    u = jnp.dot(x_blk, wvo_ref[...], preferred_element_type=f32).astype(bf16)   # (H*N, dim)
    o = jnp.dot(attn.astype(bf16), u, preferred_element_type=f32)               # (H*N, dim)

    # Sum per-head contributions (row blocks) and add the output bias.
    acc = o[0:n]
    for g in range(1, heads):
        acc = acc + o[g * n:(g + 1) * n]
    out_ref[0] = acc + bo_ref[...]


def fused_attention(x, context, bias, xmask, wq, wk_bd, wvo, b_o, heads):
    """x/context: (B,N,dim) bf16; bias: (B,H*N,H*N) f32. Returns (out, attn_full)."""
    B, N, dim = x.shape
    HN = heads * N
    Hdim = heads * dim
    HD = wq.shape[1]
    kernel = functools.partial(_fused_attention_kernel, heads)
    out, attn_full = pl.pallas_call(
        kernel,
        out_shape=(jax.ShapeDtypeStruct((B, N, dim), jnp.float32),
                   jax.ShapeDtypeStruct((B, HN, HN), jnp.float32)),
        grid=(B,),
        in_specs=[
            pl.BlockSpec((1, HN, HN), lambda b: (b, 0, 0)),   # bias
            pl.BlockSpec((1, N, dim), lambda b: (b, 0, 0)),   # x
            pl.BlockSpec((1, N, dim), lambda b: (b, 0, 0)),   # context
            pl.BlockSpec((HN, Hdim), lambda b: (0, 0)),       # head-selection mask
            pl.BlockSpec((dim, HD), lambda b: (0, 0)),        # wq (scale folded)
            pl.BlockSpec((Hdim, HD), lambda b: (0, 0)),       # wk block-diagonal
            pl.BlockSpec((Hdim, dim), lambda b: (0, 0)),      # fused wv@wo
            pl.BlockSpec((1, dim), lambda b: (0, 0)),         # b_o
        ],
        out_specs=(
            pl.BlockSpec((1, N, dim), lambda b: (b, 0, 0)),   # out (lane-dense)
            pl.BlockSpec((1, HN, HN), lambda b: (b, 0, 0)),   # attn (block-diag)
        ),
        compiler_params=pltpu.CompilerParams(
            dimension_semantics=("parallel",)),
    )(bias, x, context, xmask, wq, wk_bd, wvo, b_o)
    return out, attn_full


# ----------------------------- mask glue (boolean only) --------------------

def build_mask2d(mask, B, N, num_cls_token, seq_len_audio,
                 use_self_attention, use_cross_attention):
    """Reproduces the PyTorch mask-construction branches; returns (B,N,N) bool."""
    if mask is None:
        return jnp.ones((B, N, N), bool)
    mflat = mask.reshape(B, -1).astype(bool)
    mpad = jnp.concatenate(
        [jnp.ones((B, num_cls_token), bool), mflat], axis=1)  # F.pad(..., value=True)

    if use_self_attention and not use_cross_attention:
        trunc = mpad[:, 1:]
        idx = jnp.arange(trunc.shape[1])[None, :]
        m_audio = jnp.where(idx >= seq_len_audio, False, trunc)
        m_video = jnp.where(idx < seq_len_audio, False, trunc)
        summed = (m_audio[:, None, :] & m_audio[:, :, None]) | \
                 (m_video[:, None, :] & m_video[:, :, None])
        full = jnp.zeros((B, N, N), bool)
        full = full.at[:, 0, :].set(mpad)
        full = full.at[:, :, 0].set(mpad)
        full = full.at[:, 1:, 1:].set(summed)
        return full
    elif use_cross_attention and not use_self_attention:
        m2 = mpad[:, None, :] & mpad[:, :, None]
        i = jnp.arange(N)[:, None]
        j = jnp.arange(N)[None, :]
        sa = seq_len_audio
        block_aa = (i >= 1) & (i <= sa) & (j >= 1) & (j <= sa)
        block_vv = (i >= sa + 1) & (j >= sa + 1)
        m2 = jnp.where((block_aa | block_vv)[None], False, m2)
        return m2
    else:
        assert mpad.shape[-1] == N, "mask has incorrect dimensions"
        return mpad[:, None, :] & mpad[:, :, None]


# ----------------------------- forward wrapper ------------------------------

def new_attention_forward(params, x, seq_len_audio, context=None, mask=None, *,
                          heads, dim_head, num_cls_token=0,
                          use_cross_attention=True, use_self_attention=True):
    if context is None:
        context = x
    B, N, dim = x.shape
    H, D = heads, dim_head
    scale = dim_head ** -0.5
    bf16 = jnp.bfloat16

    # ---- weight prep (parameter-layout work, hoisted out of the hot path) ----
    # PyTorch Linear weight is (out, in); q = ctx @ w_q.T. Fold scale into Wq.
    wq = (params["w_q"].T * scale).astype(bf16)                       # (dim, H*D)

    # Block-diagonal key weight: head g occupies rows g*dim:(g+1)*dim,
    # cols g*D:(g+1)*D; zero elsewhere.
    eyeH = jnp.eye(H, dtype=jnp.float32)
    wk_t = params["w_k"].T.reshape(dim, H, D)                          # [c, g, d]
    wk_bd = (eyeH[:, None, :, None] * wk_t[None, :, :, :]
             ).reshape(H * dim, H * D).astype(bf16)                    # (H*dim, H*D)

    # Fused V/out projection: Wvo_g = Wv_g @ Wo_g, stacked along rows.
    wv_ph = params["w_v"].T.reshape(dim, H, D).transpose(1, 0, 2)      # (H, dim, D)
    wo_ph = params["w_o"].T.reshape(H, D, dim)                         # (H, D, dim)
    wvo = jnp.einsum("gcd,gdm->gcm", wv_ph, wo_ph
                     ).reshape(H * dim, dim).astype(bf16)              # (H*dim, dim)
    b_o = params["b_o"].reshape(1, dim).astype(jnp.float32)

    # Head-selection 0/1 pattern for the block-tiled inputs.
    xmask = jnp.kron(jnp.eye(H, dtype=jnp.float32),
                     jnp.ones((N, dim), jnp.float32)).astype(bf16)     # (H*N, H*dim)

    # Additive bias: 0 keep / BIAS_DROP masked-in-head / BIAS_XHEAD cross-head.
    mask2d = build_mask2d(mask, B, N, num_cls_token, seq_len_audio,
                          use_self_attention, use_cross_attention)     # (B, N, N) bool
    in_head = jnp.where(mask2d, 0.0, BIAS_DROP).astype(jnp.float32)
    eye_b = jnp.eye(H, dtype=bool)[None, :, None, :, None]             # (1,H,1,H,1)
    bias = jnp.where(eye_b, in_head[:, None, :, None, :], BIAS_XHEAD)
    bias = bias.reshape(B, H * N, H * N).astype(jnp.float32)

    # to_out includes Dropout(p=0.0) which is the identity at inference.
    out, attn_full = fused_attention(x.astype(bf16), context.astype(bf16),
                                     bias, xmask, wq, wk_bd, wvo, b_o, H)

    # Per-head attention = diagonal blocks of the block-diagonal matrix (free glue).
    af = attn_full.reshape(B, H, N, H, N)
    attn = jnp.moveaxis(jnp.diagonal(af, axis1=1, axis2=3), -1, 1)     # (B, H, N, N)
    return out, attn


# ----------------------------- params & reference ---------------------------

def init_params(key, dim, heads, dim_head):
    inner = heads * dim_head
    k1, k2, k3, k4, k5 = jax.random.split(key, 5)
    s = 0.05
    return {
        "w_q": jax.random.normal(k1, (inner, dim), jnp.float32) * s,  # (out, in)
        "w_k": jax.random.normal(k2, (inner, dim), jnp.float32) * s,
        "w_v": jax.random.normal(k3, (inner, dim), jnp.float32) * s,
        "w_o": jax.random.normal(k4, (dim, inner), jnp.float32) * s,
        "b_o": jax.random.normal(k5, (dim,), jnp.float32) * s,
    }


def reference_forward(params, x, mask2d, heads, dim_head):
    """Pure-jnp f32 reference mirroring the PyTorch forward (context = x)."""
    B, N, dim = x.shape
    inner = heads * dim_head
    scale = dim_head ** -0.5

    def proj(w):
        return (x @ w.T).reshape(B, N, heads, dim_head).transpose(0, 2, 1, 3)
    q, k, v = proj(params["w_q"]), proj(params["w_k"]), proj(params["w_v"])
    dots = jnp.einsum("bhid,bhjd->bhij", q, k) * scale
    dots = jnp.where(mask2d[:, None], dots, MASK_VALUE)
    attn = jax.nn.softmax(dots, axis=-1)
    out = jnp.einsum("bhij,bhjd->bhid", attn, v)
    out = out.transpose(0, 2, 1, 3).reshape(B, N, inner)
    out = out @ params["w_o"].T + params["b_o"]
    return out, attn


# ----------------------------- main -----------------------------------------

if __name__ == "__main__":
    B, dim, heads, dim_head = 2, 32, 4, 16
    num_cls_token = 1
    n_patches = 7
    N = num_cls_token + n_patches   # = 8
    seq_len_audio = 3

    key = jax.random.PRNGKey(0)
    kx, kp = jax.random.split(key)
    x = jax.random.normal(kx, (B, N, dim), jnp.float32)
    params = init_params(kp, dim, heads, dim_head)

    # boolean patch mask (B, n_patches): batch 0 keeps 5 patches, batch 1 keeps all
    mask = jnp.arange(n_patches)[None, :] < jnp.array([[5], [7]])

    out, attn = new_attention_forward(
        params, x, seq_len_audio, mask=mask,
        heads=heads, dim_head=dim_head, num_cls_token=num_cls_token,
        use_cross_attention=True, use_self_attention=True)
    out, attn = jax.block_until_ready((out, attn))

    # correctness check against pure-jnp f32 reference.
    # Tolerance 5e-3 accounts for bf16 MXU operands (f32 accumulation) and the
    # approx reciprocal in the softmax normalization.
    mask2d = build_mask2d(mask, B, N, num_cls_token, seq_len_audio, True, True)
    ref_out, ref_attn = reference_forward(params, x, mask2d, heads, dim_head)
    assert out.shape == (B, N, dim) and attn.shape == (B, heads, N, N)
    assert jnp.allclose(attn, ref_attn, atol=5e-3, rtol=5e-3)
    assert jnp.allclose(out, ref_out, atol=5e-3, rtol=5e-3)

    print("KERNEL_OK")
</pallas_src>

<mosaic_0001>
module attributes {stable_mosaic.version = 11 : i64} {
  func.func @_fused_attention_kernel(%arg0: i32, %arg1: memref<1x32x32xf32, #tpu.memory_space<vmem>>, %arg2: memref<1x8x32xbf16, #tpu.memory_space<vmem>>, %arg3: memref<1x8x32xbf16, #tpu.memory_space<vmem>>, %arg4: memref<32x128xbf16, #tpu.memory_space<vmem>>, %arg5: memref<32x64xbf16, #tpu.memory_space<vmem>>, %arg6: memref<128x64xbf16, #tpu.memory_space<vmem>>, %arg7: memref<128x32xbf16, #tpu.memory_space<vmem>>, %arg8: memref<1x32xf32, #tpu.memory_space<vmem>>, %arg9: memref<1x8x32xf32, #tpu.memory_space<vmem>>, %arg10: memref<1x32x32xf32, #tpu.memory_space<vmem>>) attributes {dimension_semantics = [#tpu.dimension_semantics<parallel>], iteration_bounds = array<i64: 2>, scalar_prefetch = 0 : i64, scratch_operands = 0 : i64, tpu.core_type = #tpu.core_type<tc>, window_params = [{transform_indices = @transform_0, window_bounds = array<i64: 1, 32, 32>}, {transform_indices = @transform_1, window_bounds = array<i64: 1, 8, 32>}, {transform_indices = @transform_2, window_bounds = array<i64: 1, 8, 32>}, {pipeline_mode = #tpu.pipeline_mode<synchronous>, transform_indices = @transform_3, window_bounds = array<i64: 32, 128>}, {pipeline_mode = #tpu.pipeline_mode<synchronous>, transform_indices = @transform_4, window_bounds = array<i64: 32, 64>}, {pipeline_mode = #tpu.pipeline_mode<synchronous>, transform_indices = @transform_5, window_bounds = array<i64: 128, 64>}, {pipeline_mode = #tpu.pipeline_mode<synchronous>, transform_indices = @transform_6, window_bounds = array<i64: 128, 32>}, {pipeline_mode = #tpu.pipeline_mode<synchronous>, transform_indices = @transform_7, window_bounds = array<i64: 1, 32>}, {transform_indices = @transform_8, window_bounds = array<i64: 1, 8, 32>}, {transform_indices = @transform_9, window_bounds = array<i64: 1, 32, 32>}]} {
    %c0 = arith.constant 0 : index
    %c0_0 = arith.constant 0 : index
    %c0_1 = arith.constant 0 : index
    %0 = vector.load %arg2[%c0, %c0_0, %c0_1] : memref<1x8x32xbf16, #tpu.memory_space<vmem>>, vector<1x8x32xbf16>
    %1 = vector.shape_cast %0 : vector<1x8x32xbf16> to vector<8x32xbf16>
    %c0_2 = arith.constant 0 : index
    %c0_3 = arith.constant 0 : index
    %c0_4 = arith.constant 0 : index
    %2 = vector.load %arg3[%c0_2, %c0_3, %c0_4] : memref<1x8x32xbf16, #tpu.memory_space<vmem>>, vector<1x8x32xbf16>
    %3 = vector.shape_cast %2 : vector<1x8x32xbf16> to vector<8x32xbf16>
    %4 = tpu.concatenate %1, %1, %1, %1 in 1 : vector<8x32xbf16>, vector<8x32xbf16>, vector<8x32xbf16>, vector<8x32xbf16> -> vector<8x128xbf16>
    %5 = tpu.concatenate %4, %4, %4, %4 in 0 : vector<8x128xbf16>, vector<8x128xbf16>, vector<8x128xbf16>, vector<8x128xbf16> -> vector<32x128xbf16>
    %c0_5 = arith.constant 0 : index
    %c0_6 = arith.constant 0 : index
    %6 = vector.load %arg4[%c0_5, %c0_6] : memref<32x128xbf16, #tpu.memory_space<vmem>>, vector<32x128xbf16>
    %7 = arith.mulf %5, %6 : vector<32x128xbf16>
    %c0_7 = arith.constant 0 : index
    %c0_8 = arith.constant 0 : index
    %8 = vector.load %arg5[%c0_7, %c0_8] : memref<32x64xbf16, #tpu.memory_space<vmem>>, vector<32x64xbf16>
    %cst = arith.constant dense<0.000000e+00> : vector<8x64xf32>
    %9 = tpu.matmul %3, %8, %cst {dimension_numbers = #tpu.dot_dimension_numbers<[1], [0], [0], [1], [0, 0, 1, 1], [], []>} : vector<8x32xbf16>, vector<32x64xbf16>, vector<8x64xf32> -> vector<8x64xf32>
    %10 = arith.truncf %9 : vector<8x64xf32> to vector<8x64xbf16>
    %11 = tpu.concatenate %10, %10, %10, %10 in 0 : vector<8x64xbf16>, vector<8x64xbf16>, vector<8x64xbf16>, vector<8x64xbf16> -> vector<32x64xbf16>
    %c0_9 = arith.constant 0 : index
    %c0_10 = arith.constant 0 : index
    %12 = vector.load %arg6[%c0_9, %c0_10] : memref<128x64xbf16, #tpu.memory_space<vmem>>, vector<128x64xbf16>
    %cst_11 = arith.constant dense<0.000000e+00> : vector<32x64xf32>
    %13 = tpu.matmul %7, %12, %cst_11 {dimension_numbers = #tpu.dot_dimension_numbers<[1], [0], [0], [1], [0, 0, 1, 1], [], []>} : vector<32x128xbf16>, vector<128x64xbf16>, vector<32x64xf32> -> vector<32x64xf32>
    %14 = arith.truncf %13 : vector<32x64xf32> to vector<32x64xbf16>
    %cst_12 = arith.constant dense<0.000000e+00> : vector<32x32xf32>
    %15 = tpu.matmul %11, %14, %cst_12 {dimension_numbers = #tpu.dot_dimension_numbers<[1], [1], [0], [0], [0, 0, 1, 0], [], []>} : vector<32x64xbf16>, vector<32x64xbf16>, vector<32x32xf32> -> vector<32x32xf32>
    %c0_13 = arith.constant 0 : index
    %c0_14 = arith.constant 0 : index
    %c0_15 = arith.constant 0 : index
    %16 = vector.load %arg1[%c0_13, %c0_14, %c0_15] : memref<1x32x32xf32, #tpu.memory_space<vmem>>, vector<1x32x32xf32>
    %17 = vector.shape_cast %16 : vector<1x32x32xf32> to vector<32x32xf32>
    %18 = arith.addf %15, %17 : vector<32x32xf32>
    %cst_16 = arith.constant dense<0xFF800000> : vector<32xf32>
    %19 = vector.multi_reduction <maximumf>, %18, %cst_16 [1] : vector<32x32xf32> to vector<32xf32>
    %20 = vector.shape_cast %19 : vector<32xf32> to vector<32x1xf32>
    %21 = vector.broadcast %20 : vector<32x1xf32> to vector<32x32xf32>
    %22 = arith.subf %18, %21 : vector<32x32xf32>
    %23 = math.exp %22 : vector<32x32xf32>
    %cst_17 = arith.constant dense<0.000000e+00> : vector<32xf32>
    %24 = vector.multi_reduction <add>, %23, %cst_17 [1] : vector<32x32xf32> to vector<32xf32>
    %25 = vector.shape_cast %24 : vector<32xf32> to vector<32x1xf32>
    %26 = tpu.reciprocal %25 {approx = true} : vector<32x1xf32> -> vector<32x1xf32>
    %27 = vector.broadcast %26 : vector<32x1xf32> to vector<32x32xf32>
    %28 = arith.mulf %23, %27 : vector<32x32xf32>
    %c0_18 = arith.constant 0 : index
    %c0_19 = arith.constant 0 : index
    %c0_20 = arith.constant 0 : index
    %29 = vector.load %arg10[%c0_18, %c0_19, %c0_20] : memref<1x32x32xf32, #tpu.memory_space<vmem>>, vector<1x32x32xf32>
    %30 = vector.shape_cast %29 : vector<1x32x32xf32> to vector<32x32xf32>
    %31 = vector.shape_cast %28 : vector<32x32xf32> to vector<1x32x32xf32>
    tpu.vector_store %arg10[%c0_18, %c0_19, %c0_20], %31 {strides = array<i32>} : memref<1x32x32xf32, #tpu.memory_space<vmem>>, vector<1x32x32xf32>,
    %c0_21 = arith.constant 0 : index
    %c0_22 = arith.constant 0 : index
    %32 = vector.load %arg7[%c0_21, %c0_22] : memref<128x32xbf16, #tpu.memory_space<vmem>>, vector<128x32xbf16>
    %cst_23 = arith.constant dense<0.000000e+00> : vector<32x32xf32>
    %33 = tpu.matmul %7, %32, %cst_23 {dimension_numbers = #tpu.dot_dimension_numbers<[1], [0], [0], [1], [0, 0, 1, 1], [], []>} : vector<32x128xbf16>, vector<128x32xbf16>, vector<32x32xf32> -> vector<32x32xf32>
    %34 = arith.truncf %33 : vector<32x32xf32> to vector<32x32xbf16>
    %35 = arith.truncf %28 : vector<32x32xf32> to vector<32x32xbf16>
    %cst_24 = arith.constant dense<0.000000e+00> : vector<32x32xf32>
    %36 = tpu.matmul %35, %34, %cst_24 {dimension_numbers = #tpu.dot_dimension_numbers<[1], [0], [0], [1], [0, 0, 1, 1], [], []>} : vector<32x32xbf16>, vector<32x32xbf16>, vector<32x32xf32> -> vector<32x32xf32>
    %37 = vector.extract_strided_slice %36 {offsets = [0, 0], sizes = [8, 32], strides = [1, 1]} : vector<32x32xf32> to vector<8x32xf32>
    %38 = vector.extract_strided_slice %36 {offsets = [8, 0], sizes = [8, 32], strides = [1, 1]} : vector<32x32xf32> to vector<8x32xf32>
    %39 = arith.addf %37, %38 : vector<8x32xf32>
    %40 = vector.extract_strided_slice %36 {offsets = [16, 0], sizes = [8, 32], strides = [1, 1]} : vector<32x32xf32> to vector<8x32xf32>
    %41 = arith.addf %39, %40 : vector<8x32xf32>
    %42 = vector.extract_strided_slice %36 {offsets = [24, 0], sizes = [8, 32], strides = [1, 1]} : vector<32x32xf32> to vector<8x32xf32>
    %43 = arith.addf %41, %42 : vector<8x32xf32>
    %c0_25 = arith.constant 0 : index
    %c0_26 = arith.constant 0 : index
    %44 = vector.load %arg8[%c0_25, %c0_26] : memref<1x32xf32, #tpu.memory_space<vmem>>, vector<1x32xf32>
    %45 = vector.broadcast %44 : vector<1x32xf32> to vector<8x32xf32>
    %46 = arith.addf %43, %45 : vector<8x32xf32>
    %c0_27 = arith.constant 0 : index
    %c0_28 = arith.constant 0 : index
    %c0_29 = arith.constant 0 : index
    %47 = vector.load %arg9[%c0_27, %c0_28, %c0_29] : memref<1x8x32xf32, #tpu.memory_space<vmem>>, vector<1x8x32xf32>
    %48 = vector.shape_cast %47 : vector<1x8x32xf32> to vector<8x32xf32>
    %49 = vector.shape_cast %46 : vector<8x32xf32> to vector<1x8x32xf32>
    tpu.vector_store %arg9[%c0_27, %c0_28, %c0_29], %49 {strides = array<i32>} : memref<1x8x32xf32, #tpu.memory_space<vmem>>, vector<1x8x32xf32>,
    return
  }
  func.func @transform_0(%arg0: i32) -> (i32, i32, i32) {
    %c0_i32 = arith.constant 0 : i32
    %c0_i32_0 = arith.constant 0 : i32
    %c0_i32_1 = arith.constant 0 : i32
    return %arg0, %c0_i32, %c0_i32_0 : i32, i32, i32
  }
  func.func @transform_1(%arg0: i32) -> (i32, i32, i32) {
    %c0_i32 = arith.constant 0 : i32
    %c0_i32_0 = arith.constant 0 : i32
    %c0_i32_1 = arith.constant 0 : i32
    return %arg0, %c0_i32, %c0_i32_0 : i32, i32, i32
  }
  func.func @transform_2(%arg0: i32) -> (i32, i32, i32) {
    %c0_i32 = arith.constant 0 : i32
    %c0_i32_0 = arith.constant 0 : i32
    %c0_i32_1 = arith.constant 0 : i32
    return %arg0, %c0_i32, %c0_i32_0 : i32, i32, i32
  }
  func.func @transform_3(%arg0: i32) -> (i32, i32) {
    %c0_i32 = arith.constant 0 : i32
    %c0_i32_0 = arith.constant 0 : i32
    %c0_i32_1 = arith.constant 0 : i32
    return %c0_i32, %c0_i32_0 : i32, i32
  }
  func.func @transform_4(%arg0: i32) -> (i32, i32) {
    %c0_i32 = arith.constant 0 : i32
    %c0_i32_0 = arith.constant 0 : i32
    %c0_i32_1 = arith.constant 0 : i32
    return %c0_i32, %c0_i32_0 : i32, i32
  }
  func.func @transform_5(%arg0: i32) -> (i32, i32) {
    %c0_i32 = arith.constant 0 : i32
    %c0_i32_0 = arith.constant 0 : i32
    %c0_i32_1 = arith.constant 0 : i32
    return %c0_i32, %c0_i32_0 : i32, i32
  }
  func.func @transform_6(%arg0: i32) -> (i32, i32) {
    %c0_i32 = arith.constant 0 : i32
    %c0_i32_0 = arith.constant 0 : i32
    %c0_i32_1 = arith.constant 0 : i32
    return %c0_i32, %c0_i32_0 : i32, i32
  }
  func.func @transform_7(%arg0: i32) -> (i32, i32) {
    %c0_i32 = arith.constant 0 : i32
    %c0_i32_0 = arith.constant 0 : i32
    %c0_i32_1 = arith.constant 0 : i32
    return %c0_i32, %c0_i32_0 : i32, i32
  }
  func.func @transform_8(%arg0: i32) -> (i32, i32, i32) {
    %c0_i32 = arith.constant 0 : i32
    %c0_i32_0 = arith.constant 0 : i32
    %c0_i32_1 = arith.constant 0 : i32
    return %arg0, %c0_i32, %c0_i32_0 : i32, i32, i32
  }
  func.func @transform_9(%arg0: i32) -> (i32, i32, i32) {
    %c0_i32 = arith.constant 0 : i32
    %c0_i32_0 = arith.constant 0 : i32
    %c0_i32_1 = arith.constant 0 : i32
    return %arg0, %c0_i32, %c0_i32_0 : i32, i32, i32
  }
}

</mosaic_0001>

<llo_original>
// kernel: tpu_custom_call.1
$region0: #{tpu_custom_call.1}
  #allocation0 [shape = 'u32[]', space=smem, size = 0x4, offset = 0x4, fixed_abs, tag = 'smem constant byte address 0x4 - core index']
  #allocation1 [shape = 'u32[144,128]{1,0:T(1,128)}', space=vmem, size = 0x12000, scoped, tag = 'internal scratch']
  %s0 = inlined_call_operand.vmem [shape: f32[2,32,32], index: 0, kind: input, shape index: {}]
  %s1 = inlined_call_operand.vmem [shape: bf16[2,8,32], index: 1, kind: input, shape index: {}]
  %s2 = inlined_call_operand.vmem [shape: bf16[2,8,32], index: 2, kind: input, shape index: {}]
  %s3 = inlined_call_operand.vmem [shape: bf16[32,128], index: 3, kind: input, shape index: {}]
  %s4 = inlined_call_operand.vmem [shape: bf16[32,64], index: 4, kind: input, shape index: {}]
  %s5 = inlined_call_operand.vmem [shape: bf16[128,64], index: 5, kind: input, shape index: {}]
  %s6 = inlined_call_operand.vmem [shape: bf16[128,32], index: 6, kind: input, shape index: {}]
  %s7 = inlined_call_operand.vmem [shape: f32[1,32], index: 7, kind: input, shape index: {}]
  %s8 = inlined_call_operand.hbm [shape: f32[2,8,32], index: 8, kind: output, shape index: {0}]
  %s9 = inlined_call_operand.hbm [shape: f32[2,32,32], index: 9, kind: output, shape index: {1}]
  %10 = xla_tuple %s8, %s9
  %s11 = sld [smem:[#allocation0]]
  $region73: #{tpu_custom_call.1} parent=0
    _
  %s13 = ssub.s32 1, %s11
  %s14 = scalar_select 0, %s13, %s11
  $region1: #{tpu_custom_call.1} parent=0
    #allocation2 [shape = 'u8[8192]{0}', space=vmem, size = 0x2000, scoped, tag = 'output window, operand 0']
    #allocation3 [shape = 's32[2]{0}', space=sflag, size = 0x8, scoped, tag = 'scoped memory for tpu_custom_call.1']
    #allocation4 [shape = 'u8[32768]{0}', space=vmem, size = 0x8000, scoped, tag = 'output window, operand 1']
    #allocation5 [shape = 's32[2]{0}', space=sflag, size = 0x8, scoped, tag = 'scoped memory for tpu_custom_call.1']
    %15 = vsyncpa [#allocation3], 0
    %s16 = scalar_lea.sflag [#allocation3], 1
    %17 = vsyncpa %s16, 0
    %18 = vsyncpa [#allocation5], 0
    %s19 = scalar_lea.sflag [#allocation5], 1
    %20 = vsyncpa %s19, 0
    loop: start=0, step=1, limit=4
    $region2: #{tpu_custom_call.1} parent=1 // loop_pre_header
      _
    $region3: #{tpu_custom_call.1} parent=1 // loop_header
      %s22 = sphi 0, %s26
      %p23 = scmp.ge.s32.totalorder %s22, 4
      %s32 = sphi 0, %s34
      %s35 = sphi 0, %s32
      %s36 = sphi 0, %s35
      %s52 = sphi 0, %s36
      %s58 = sphi 0, %s60
      %s61 = sphi 0, %s58
      %s62 = sphi 0, %s61
      %s78 = sphi 0, %s62
      %s84 = sphi 0, %s86
      %s87 = sphi 0, %s84
      %s88 = sphi 0, %s87
      %s104 = sphi 0, %s88
      %s108 = sphi 0, %s108
      %s110 = sphi 0, %s108
      %s111 = sphi 0, %s110
      %s125 = sphi 0, %s111
      %s129 = sphi 0, %s129
      %s131 = sphi 0, %s129
      %s132 = sphi 0, %s131
      %s146 = sphi 0, %s132
      %s150 = sphi 0, %s150
      %s152 = sphi 0, %s150
      %s153 = sphi 0, %s152
      %s167 = sphi 0, %s153
      %s171 = sphi 0, %s171
      %s173 = sphi 0, %s171
      %s174 = sphi 0, %s173
      %s188 = sphi 0, %s174
      %s192 = sphi 0, %s192
      %s194 = sphi 0, %s192
      %s195 = sphi 0, %s194
      %s209 = sphi 0, %s195
      %s215 = sphi 0, %s217
      %s218 = sphi 0, %s215
      %s219 = sphi 0, %s218
      %s235 = sphi 0, %s219
      %s241 = sphi 0, %s243
      %s244 = sphi 0, %s241
      %s245 = sphi 0, %s244
      %s261 = sphi 0, %s245
    $region4: #{tpu_custom_call.1} parent=1 // loop_header_branch
      %25 = sbr.rel (%p23) target = $region8
    $region5: #{tpu_custom_call.1} parent=1 // loop_body
      %s27 = ssub.s32 %s22, 1
      %s28 = ssub.s32 %s22, 2
      %s29 = sadd.s32 %s22, 1
      %s30 = ssub.s32 %s22, %s29
      %p31 = scmp.eq.s32.totalorder %s30, 0
      %s33 = sadd.s32 %s32, 1
      %s34 = scalar_select %p31, %s32, %s33
      %p37 = pneg %p31
      %p38 = scmp.eq.s32.totalorder %s22, 1
      %p39 = por %p37, %p38
      %p40 = scmp.ne.s32.totalorder %s32, %s35
      %p41 = scmp.eq.s32.totalorder %s22, 0
      %p42 = por %p40, %p41
      %p43 = scmp.ne.s32.totalorder %s32, %s35
      %p44 = scmp.eq.s32.totalorder %s27, 1
      %p45 = por %p43, %p44
      %p46 = scmp.ne.s32.totalorder %s35, %s36
      %p47 = scmp.eq.s32.totalorder %s27, 0
      %p48 = por %p46, %p47
      %p49 = scmp.ne.s32.totalorder %s35, %s36
      %p50 = scmp.eq.s32.totalorder %s28, 1
      %p51 = por %p49, %p50
      %p53 = scmp.ne.s32.totalorder %s36, %s52
      %p54 = scmp.eq.s32.totalorder %s28, 0
      %p55 = por %p53, %p54
      %s56 = ssub.s32 %s22, %s29
      %p57 = scmp.eq.s32.totalorder %s56, 0
      %s59 = sadd.s32 %s58, 1
      %s60 = scalar_select %p57, %s58, %s59
      %p63 = pneg %p57
      %p64 = scmp.eq.s32.totalorder %s22, 1
      %p65 = por %p63, %p64
      %p66 = scmp.ne.s32.totalorder %s58, %s61
      %p67 = scmp.eq.s32.totalorder %s22, 0
      %p68 = por %p66, %p67
      %p69 = scmp.ne.s32.totalorder %s58, %s61
      %p70 = scmp.eq.s32.totalorder %s27, 1
      %p71 = por %p69, %p70
      %p72 = scmp.ne.s32.totalorder %s61, %s62
      %p73 = scmp.eq.s32.totalorder %s27, 0
      %p74 = por %p72, %p73
      %p75 = scmp.ne.s32.totalorder %s61, %s62
      %p76 = scmp.eq.s32.totalorder %s28, 1
      %p77 = por %p75, %p76
      %p79 = scmp.ne.s32.totalorder %s62, %s78
      %p80 = scmp.eq.s32.totalorder %s28, 0
      %p81 = por %p79, %p80
      %s82 = ssub.s32 %s22, %s29
      %p83 = scmp.eq.s32.totalorder %s82, 0
      %s85 = sadd.s32 %s84, 1
      %s86 = scalar_select %p83, %s84, %s85
      %p89 = pneg %p83
      %p90 = scmp.eq.s32.totalorder %s22, 1
      %p91 = por %p89, %p90
      %p92 = scmp.ne.s32.totalorder %s84, %s87
      %p93 = scmp.eq.s32.totalorder %s22, 0
      %p94 = por %p92, %p93
      %p95 = scmp.ne.s32.totalorder %s84, %s87
      %p96 = scmp.eq.s32.totalorder %s27, 1
      %p97 = por %p95, %p96
      %p98 = scmp.ne.s32.totalorder %s87, %s88
      %p99 = scmp.eq.s32.totalorder %s27, 0
      %p100 = por %p98, %p99
      %p101 = scmp.ne.s32.totalorder %s87, %s88
      %p102 = scmp.eq.s32.totalorder %s28, 1
      %p103 = por %p101, %p102
      %p105 = scmp.ne.s32.totalorder %s88, %s104
      %p106 = scmp.eq.s32.totalorder %s28, 0
      %p107 = por %p105, %p106
      %s109 = sadd.s32 %s108, 1
      %p112 = scmp.eq.s32.totalorder %s22, 1
      %p113 = scmp.ne.s32.totalorder %s108, %s110
      %p114 = scmp.eq.s32.totalorder %s22, 0
      %p115 = por %p113, %p114
      %p116 = scmp.ne.s32.totalorder %s108, %s110
      %p117 = scmp.eq.s32.totalorder %s27, 1
      %p118 = por %p116, %p117
      %p119 = scmp.ne.s32.totalorder %s110, %s111
      %p120 = scmp.eq.s32.totalorder %s27, 0
      %p121 = por %p119, %p120
      %p122 = scmp.ne.s32.totalorder %s110, %s111
      %p123 = scmp.eq.s32.totalorder %s28, 1
      %p124 = por %p122, %p123
      %p126 = scmp.ne.s32.totalorder %s111, %s125
      %p127 = scmp.eq.s32.totalorder %s28, 0
      %p128 = por %p126, %p127
      %s130 = sadd.s32 %s129, 1
      %p133 = scmp.eq.s32.totalorder %s22, 1
      %p134 = scmp.ne.s32.totalorder %s129, %s131
      %p135 = scmp.eq.s32.totalorder %s22, 0
      %p136 = por %p134, %p135
      %p137 = scmp.ne.s32.totalorder %s129, %s131
      %p138 = scmp.eq.s32.totalorder %s27, 1
      %p139 = por %p137, %p138
      %p140 = scmp.ne.s32.totalorder %s131, %s132
      %p141 = scmp.eq.s32.totalorder %s27, 0
      %p142 = por %p140, %p141
      %p143 = scmp.ne.s32.totalorder %s131, %s132
      %p144 = scmp.eq.s32.totalorder %s28, 1
      %p145 = por %p143, %p144
      %p147 = scmp.ne.s32.totalorder %s132, %s146
      %p148 = scmp.eq.s32.totalorder %s28, 0
      %p149 = por %p147, %p148
      %s151 = sadd.s32 %s150, 1
      %p154 = scmp.eq.s32.totalorder %s22, 1
      %p155 = scmp.ne.s32.totalorder %s150, %s152
      %p156 = scmp.eq.s32.totalorder %s22, 0
      %p157 = por %p155, %p156
      %p158 = scmp.ne.s32.totalorder %s150, %s152
      %p159 = scmp.eq.s32.totalorder %s27, 1
      %p160 = por %p158, %p159
      %p161 = scmp.ne.s32.totalorder %s152, %s153
      %p162 = scmp.eq.s32.totalorder %s27, 0
      %p163 = por %p161, %p162
      %p164 = scmp.ne.s32.totalorder %s152, %s153
      %p165 = scmp.eq.s32.totalorder %s28, 1
      %p166 = por %p164, %p165
      %p168 = scmp.ne.s32.totalorder %s153, %s167
      %p169 = scmp.eq.s32.totalorder %s28, 0
      %p170 = por %p168, %p169
      %s172 = sadd.s32 %s171, 1
      %p175 = scmp.eq.s32.totalorder %s22, 1
      %p176 = scmp.ne.s32.totalorder %s171, %s173
      %p177 = scmp.eq.s32.totalorder %s22, 0
      %p178 = por %p176, %p177
      %p179 = scmp.ne.s32.totalorder %s171, %s173
      %p180 = scmp.eq.s32.totalorder %s27, 1
      %p181 = por %p179, %p180
      %p182 = scmp.ne.s32.totalorder %s173, %s174
      %p183 = scmp.eq.s32.totalorder %s27, 0
      %p184 = por %p182, %p183
      %p185 = scmp.ne.s32.totalorder %s173, %s174
      %p186 = scmp.eq.s32.totalorder %s28, 1
      %p187 = por %p185, %p186
      %p189 = scmp.ne.s32.totalorder %s174, %s188
      %p190 = scmp.eq.s32.totalorder %s28, 0
      %p191 = por %p189, %p190
      %s193 = sadd.s32 %s192, 1
      %p196 = scmp.eq.s32.totalorder %s22, 1
      %p197 = scmp.ne.s32.totalorder %s192, %s194
      %p198 = scmp.eq.s32.totalorder %s22, 0
      %p199 = por %p197, %p198
      %p200 = scmp.ne.s32.totalorder %s192, %s194
      %p201 = scmp.eq.s32.totalorder %s27, 1
      %p202 = por %p200, %p201
      %p203 = scmp.ne.s32.totalorder %s194, %s195
      %p204 = scmp.eq.s32.totalorder %s27, 0
      %p205 = por %p203, %p204
      %p206 = scmp.ne.s32.totalorder %s194, %s195
      %p207 = scmp.eq.s32.totalorder %s28, 1
      %p208 = por %p206, %p207
      %p210 = scmp.ne.s32.totalorder %s195, %s209
      %p211 = scmp.eq.s32.totalorder %s28, 0
      %p212 = por %p210, %p211
      %s213 = ssub.s32 %s22, %s29
      %p214 = scmp.eq.s32.totalorder %s213, 0
      %s216 = sadd.s32 %s215, 1
      %s217 = scalar_select %p214, %s215, %s216
      %p220 = pneg %p214
      %p221 = scmp.eq.s32.totalorder %s22, 1
      %p222 = por %p220, %p221
      %p223 = scmp.ne.s32.totalorder %s215, %s218
      %p224 = scmp.eq.s32.totalorder %s22, 0
      %p225 = por %p223, %p224
      %p226 = scmp.ne.s32.totalorder %s215, %s218
      %p227 = scmp.eq.s32.totalorder %s27, 1
      %p228 = por %p226, %p227
      %p229 = scmp.ne.s32.totalorder %s218, %s219
      %p230 = scmp.eq.s32.totalorder %s27, 0
      %p231 = por %p229, %p230
      %p232 = scmp.ne.s32.totalorder %s218, %s219
      %p233 = scmp.eq.s32.totalorder %s28, 1
      %p234 = por %p232, %p233
      %p236 = scmp.ne.s32.totalorder %s219, %s235
      %p237 = scmp.eq.s32.totalorder %s28, 0
      %p238 = por %p236, %p237
      %s239 = ssub.s32 %s22, %s29
      %p240 = scmp.eq.s32.totalorder %s239, 0
      %s242 = sadd.s32 %s241, 1
      %s243 = scalar_select %p240, %s241, %s242
      %p246 = pneg %p240
      %p247 = scmp.eq.s32.totalorder %s22, 1
      %p248 = por %p246, %p247
      %p249 = scmp.ne.s32.totalorder %s241, %s244
      %p250 = scmp.eq.s32.totalorder %s22, 0
      %p251 = por %p249, %p250
      %p252 = scmp.ne.s32.totalorder %s241, %s244
      %p253 = scmp.eq.s32.totalorder %s27, 1
      %p254 = por %p252, %p253
      %p255 = scmp.ne.s32.totalorder %s244, %s245
      %p256 = scmp.eq.s32.totalorder %s27, 0
      %p257 = por %p255, %p256
      %p258 = scmp.ne.s32.totalorder %s244, %s245
      %p259 = scmp.eq.s32.totalorder %s28, 1
      %p260 = por %p258, %p259
      %p262 = scmp.ne.s32.totalorder %s245, %s261
      %p263 = scmp.eq.s32.totalorder %s28, 0
      %p264 = por %p262, %p263
      %p265 = scmp.le.s32.totalorder 1, %s22
      %p266 = scmp.lt.s32.totalorder %s22, 3
      %p267 = pnand %p265, %p266
      %p268 = pneg %p267
      // Predicated region
      $region9: #{tpu_custom_call.1} parent=5 // pred_check
        _
      $region10: #{tpu_custom_call.1} parent=5 // pred_check_branch
        %270 = sbr.rel (%p267) target = $region12
      $region11: #{tpu_custom_call.1} parent=5 // pred_region
        %s271 = ssub.s32 %s22, 1
        // Predicated region
        $region13: #{tpu_custom_call.1} parent=11 // pred_check
          %p272 = pneg %p121
        $region14: #{tpu_custom_call.1} parent=11 // pred_check_branch
          %274 = sbr.rel (%p272) target = $region16
        $region15: #{tpu_custom_call.1} parent=11 // pred_region
          _
        $region16: #{tpu_custom_call.1} parent=11 // pred_fallthru
          _
        // Predicated region
        $region17: #{tpu_custom_call.1} parent=11 // pred_check
          %p275 = pneg %p142
        $region18: #{tpu_custom_call.1} parent=11 // pred_check_branch
          %277 = sbr.rel (%p275) target = $region20
        $region19: #{tpu_custom_call.1} parent=11 // pred_region
          _
        $region20: #{tpu_custom_call.1} parent=11 // pred_fallthru
          _
        // Predicated region
        $region21: #{tpu_custom_call.1} parent=11 // pred_check
          %p278 = pneg %p163
        $region22: #{tpu_custom_call.1} parent=11 // pred_check_branch
          %280 = sbr.rel (%p278) target = $region24
        $region23: #{tpu_custom_call.1} parent=11 // pred_region
          _
        $region24: #{tpu_custom_call.1} parent=11 // pred_fallthru
          _
        // Predicated region
        $region25: #{tpu_custom_call.1} parent=11 // pred_check
          %p281 = pneg %p184
        $region26: #{tpu_custom_call.1} parent=11 // pred_check_branch
          %283 = sbr.rel (%p281) target = $region28
        $region27: #{tpu_custom_call.1} parent=11 // pred_region
          _
        $region28: #{tpu_custom_call.1} parent=11 // pred_fallthru
          _
        // Predicated region
        $region29: #{tpu_custom_call.1} parent=11 // pred_check
          %p284 = pneg %p205
        $region30: #{tpu_custom_call.1} parent=11 // pred_check_branch
          %286 = sbr.rel (%p284) target = $region32
        $region31: #{tpu_custom_call.1} parent=11 // pred_region
          _
        $region32: #{tpu_custom_call.1} parent=11 // pred_fallthru
          _
      $region12: #{tpu_custom_call.1} parent=5 // pred_fallthru
        _
      %p287 = scmp.lt.s32.totalorder %s22, 2
      // Predicated region
      $region33: #{tpu_custom_call.1} parent=5 // pred_check
        %p288 = pneg %p287
      $region34: #{tpu_custom_call.1} parent=5 // pred_check_branch
        %290 = sbr.rel (%p288) target = $region36
      $region35: #{tpu_custom_call.1} parent=5 // pred_region
        // Predicated region
        $region37: #{tpu_custom_call.1} parent=35 // pred_check
          %p291 = pneg %p42
        $region38: #{tpu_custom_call.1} parent=35 // pred_check_branch
          %293 = sbr.rel (%p291) target = $region40
        $region39: #{tpu_custom_call.1} parent=35 // pred_region
          %p294 = scmp.lt.s32.totalorder %s22, 1
          %s295 = scalar_select %p294, %s22, 1
          %s296 = smul.addr %s295, 4
          %s297 = smul.addr %s296, 8
          %s298 = scalar_lea.vmem %s0, %s297
        $region40: #{tpu_custom_call.1} parent=35 // pred_fallthru
          _
        // Predicated region
        $region41: #{tpu_custom_call.1} parent=35 // pred_check
          %p299 = pneg %p68
        $region42: #{tpu_custom_call.1} parent=35 // pred_check_branch
          %301 = sbr.rel (%p299) target = $region44
        $region43: #{tpu_custom_call.1} parent=35 // pred_region
          %p302 = scmp.lt.s32.totalorder %s22, 1
          %s303 = scalar_select %p302, %s22, 1
          %s304 = smul.addr %s303, 4
          %s305 = scalar_lea.vmem %s1, %s304
        $region44: #{tpu_custom_call.1} parent=35 // pred_fallthru
          _
        // Predicated region
        $region45: #{tpu_custom_call.1} parent=35 // pred_check
          %p306 = pneg %p94
        $region46: #{tpu_custom_call.1} parent=35 // pred_check_branch
          %308 = sbr.rel (%p306) target = $region48
        $region47: #{tpu_custom_call.1} parent=35 // pred_region
          %p309 = scmp.lt.s32.totalorder %s22, 1
          %s310 = scalar_select %p309, %s22, 1
          %s311 = smul.addr %s310, 4
          %s312 = scalar_lea.vmem %s2, %s311
        $region48: #{tpu_custom_call.1} parent=35 // pred_fallthru
          _
      $region36: #{tpu_custom_call.1} parent=5 // pred_fallthru
        _
      %p313 = scmp.le.s32.totalorder 1, %s22
      %p314 = scmp.lt.s32.totalorder %s22, 3
      %p315 = pnand %p313, %p314
      %p316 = pneg %p315
      // Predicated region
      $region49: #{tpu_custom_call.1} parent=5 // pred_check
        _
      $region50: #{tpu_custom_call.1} parent=5 // pred_check_branch
        %318 = sbr.rel (%p315) target = $region52
      $region51: #{tpu_custom_call.1} parent=5 // pred_region
        %s319 = ssub.s32 %s22, 1
        %p320 = scmp.lt.s32.totalorder %s27, 1
        %s321 = scalar_select %p320, %s27, 1
        %s322 = smul.addr %s321, 4
        %s323 = smul.addr %s322, 8
        %s324 = scalar_lea.vmem %s0, %s323
        %p325 = pneg %p48
        %p326 = pneg %p45
        %p327 = scmp.lt.s32.totalorder %s27, 1
        %s328 = scalar_select %p327, %s27, 1
        %s329 = smul.addr %s328, 4
        %s330 = scalar_lea.vmem %s1, %s329
        %p331 = pneg %p74
        %p332 = pneg %p71
        %p333 = scmp.lt.s32.totalorder %s27, 1
        %s334 = scalar_select %p333, %s27, 1
        %s335 = smul.addr %s334, 4
        %s336 = scalar_lea.vmem %s2, %s335
        %p337 = pneg %p100
        %p338 = pneg %p97
        %p339 = pneg %p121
        %p340 = pneg %p118
        %p341 = pneg %p142
        %p342 = pneg %p139
        %p343 = pneg %p163
        %p344 = pneg %p160
        %p345 = pneg %p184
        %p346 = pneg %p181
        %p347 = pneg %p205
        %p348 = pneg %p202
        %p349 = pneg %p231
        %p350 = pneg %p228
        %s351 = sand.u32 %s218, 1
        %s352 = scalar_lea.sflag [#allocation3], %s351
        %s353 = sand.u32 %s218, 1
        %s354 = smul.addr %s353, 8
        %s355 = scalar_lea.vmem [#allocation2], %s354
        %p356 = pneg %p257
        %p357 = pneg %p254
        %s358 = sand.u32 %s244, 1
        %s359 = scalar_lea.sflag [#allocation5], %s358
        %s360 = sand.u32 %s244, 1
        %s361 = smul.addr %s360, 32
        %s362 = scalar_lea.vmem [#allocation4], %s361
        %p363 = scmp.lt.s32.totalorder %s27, 1
        %s364 = scalar_select %p363, %s27, 1
        %s365 = smul.addr %s364, 4
        %s366 = smul.addr %s365, 8
        %s367 = scalar_lea.vmem %s0, %s366
        %p368 = scmp.lt.s32.totalorder %s27, 1
        %s369 = scalar_select %p368, %s27, 1
        %s370 = smul.addr %s369, 4
        %s371 = scalar_lea.vmem %s1, %s370
        %p372 = scmp.lt.s32.totalorder %s27, 1
        %s373 = scalar_select %p372, %s27, 1
        %s374 = smul.addr %s373, 4
        %s375 = scalar_lea.vmem %s2, %s374
        %v377 = vld [vmem:[%s371] sm:$0xf]
        %v378 = vld [vmem:[%s375] sm:$0xf]
        %v380 = vunpack.c.l.b16 %v377
        %v381 = vpack.c.b16 %v380, %v380
        %382 = vrot.lane.b32.xlu0 %v381, 32
        %v383 = vpop.permute.xlu0 %382
        %384 = vrot.lane.b32.xlu0 %v381, 64
        %v385 = vpop.permute.xlu0 %384
        %386 = vrot.lane.b32.xlu0 %v381, 96
        %v387 = vpop.permute.xlu0 %386
        %vm388 = vcmask 261120
        %v391 = vsel %vm388, %v377, %v383
        %vm392 = vcmask 523264
        %v394 = vsel %vm392, %v391, %v385
        %vm395 = vcmask 785408
        %v397 = vsel %vm395, %v394, %v387
        %v399 = vrot.slane %v397, 4
        %vm400 = vcmask 1043456
        %v402 = vsel %vm400, %v397, %v399
        %v404 = vld [vmem:[%s3] sm:$0xf]
        %v405 = vld [vmem:[%s3 + $0x4] sm:$0xf]
        %v406 = vld [vmem:[%s3 + $0x8] sm:$0xf]
        %v407 = vld [vmem:[%s3 + $0xc] sm:$0xf]
        %v412 = vunpack.c.l.b16 %v404
        %v413 = vunpack.c.l.b16 %v405
        %v414 = vunpack.c.l.b16 %v406
        %v415 = vunpack.c.l.b16 %v407
        %v416 = vpack.c.b16 %v413, %v412
        %v417 = vpack.c.b16 %v415, %v414
        %v420 = vmul.bf16 %v402, %v416
        %v421 = vmul.bf16 %v402, %v417
        %v422 = vld [vmem:[%s4] sm:$0xf]
        %v423 = vld [vmem:[%s4 + $0x4] sm:$0xf]
        %v424 = vld [vmem:[%s4 + $0x8] sm:$0xf]
        %v425 = vld [vmem:[%s4 + $0xc] sm:$0xf]
        %v430 = vunpack.c.l.b16 %v422
        %v431 = vunpack.c.l.b16 %v423
        %v432 = vunpack.c.l.b16 %v424
        %v433 = vunpack.c.l.b16 %v425
        %v434 = vpack.c.b16 %v431, %v430
        %v435 = vpack.c.b16 %v433, %v432
        %v439 = vsel %vm388, %v378, 0
        %441 = vmatprep.subr.bf16.mxu0 0
        %442 = vmatpush1.bf16.msra.mxu0 0
        %443 = vmatprep.subr.bf16.mxu0 0
        %444 = vmatpush1.bf16.msra.mxu0 0
        %445 = vmatprep.subr.bf16.mxu0 0
        %446 = vmatpush1.bf16.msra.mxu0 0
        %447 = vmatprep.subr.bf16.mxu0 0
        %448 = vmatpush1.bf16.msra.mxu0 0
        %449 = vmatprep.subr.bf16.mxu0 0
        %450 = vmatpush1.bf16.msra.mxu0 0
        %451 = vmatprep.subr.bf16.mxu0 0
        %452 = vmatpush1.bf16.msra.mxu0 0
        %453 = vmatprep.subr.bf16.mxu0 0
        %454 = vmatpush1.bf16.msra.mxu0 %v435
        %455 = vmatprep.subr.bf16.mxu0 0
        %456 = vmatpush1.bf16.msra.mxu0 %v434
        %457 = vmatprep.subr.bf16.mxu0 0
        %458 = vmatpush2.bf16.msra.mxu0 0
        %459 = vmatprep.subr.bf16.mxu0 0
        %460 = vmatpush2.bf16.msra.mxu0 0
        %461 = vmatprep.subr.bf16.mxu0 0
        %462 = vmatpush2.bf16.msra.mxu0 0
        %463 = vmatprep.subr.bf16.mxu0 0
        %464 = vmatpush2.bf16.msra.mxu0 0
        %465 = vmatprep.subr.bf16.mxu0 0
        %466 = vmatpush2.bf16.msra.mxu0 0
        %467 = vmatprep.subr.bf16.mxu0 0
        %468 = vmatpush2.bf16.msra.mxu0 0
        %469 = vmatprep.subr.bf16.mxu0 0
        %470 = vmatpush2.bf16.msra.mxu0 0
        %471 = vmatprep.subr.bf16.mxu0 0
        %472 = vmatpush2.bf16.msra.mxu0 0
        %473 = vmatprep.mubr.bf16.mxu0 0
        %474 = vmatmul.mubr.bf16.gmra.mxu0 %v439
        %v475 = vpop.f32.mrf.mxu0
        %v476 = vadd.f32 0.0, %v475
        %v477 = vpop.f32.mrf.mxu0
        %v478 = vpop.f32.mrf.mxu0
        %v479 = vpop.f32.mrf.mxu0
        %480 = vdwg.mxu0
        %v481 = vpack.c.bf16 %v476, %v476
        %v483 = vrot.slane %v481, 4
        %v486 = vsel %vm400, %v481, %v483
        %v487 = vld [vmem:[%s5] sm:$0xf]
        %v488 = vld [vmem:[%s5 + $0x4] sm:$0xf]
        %v489 = vld [vmem:[%s5 + $0x8] sm:$0xf]
        %v490 = vld [vmem:[%s5 + $0xc] sm:$0xf]
        %v491 = vld [vmem:[%s5 + $0x10] sm:$0xf]
        %v492 = vld [vmem:[%s5 + $0x14] sm:$0xf]
        %v493 = vld [vmem:[%s5 + $0x18] sm:$0xf]
        %v494 = vld [vmem:[%s5 + $0x1c] sm:$0xf]
        %v495 = vld [vmem:[%s5 + $0x20] sm:$0xf]
        %v496 = vld [vmem:[%s5 + $0x24] sm:$0xf]
        %v497 = vld [vmem:[%s5 + $0x28] sm:$0xf]
        %v498 = vld [vmem:[%s5 + $0x2c] sm:$0xf]
        %v499 = vld [vmem:[%s5 + $0x30] sm:$0xf]
        %v500 = vld [vmem:[%s5 + $0x34] sm:$0xf]
        %v501 = vld [vmem:[%s5 + $0x38] sm:$0xf]
        %v502 = vld [vmem:[%s5 + $0x3c] sm:$0xf]
        %v519 = vunpack.c.l.b16 %v487
        %v520 = vunpack.c.l.b16 %v488
        %v521 = vunpack.c.l.b16 %v489
        %v522 = vunpack.c.l.b16 %v490
        %v523 = vunpack.c.l.b16 %v491
        %v524 = vunpack.c.l.b16 %v492
        %v525 = vunpack.c.l.b16 %v493
        %v526 = vunpack.c.l.b16 %v494
        %v527 = vunpack.c.l.b16 %v495
        %v528 = vunpack.c.l.b16 %v496
        %v529 = vunpack.c.l.b16 %v497
        %v530 = vunpack.c.l.b16 %v498
        %v531 = vunpack.c.l.b16 %v499
        %v532 = vunpack.c.l.b16 %v500
        %v533 = vunpack.c.l.b16 %v501
        %v534 = vunpack.c.l.b16 %v502
        %v535 = vpack.c.b16 %v520, %v519
        %v536 = vpack.c.b16 %v522, %v521
        %v537 = vpack.c.b16 %v524, %v523
        %v538 = vpack.c.b16 %v526, %v525
        %v539 = vpack.c.b16 %v528, %v527
        %v540 = vpack.c.b16 %v530, %v529
        %v541 = vpack.c.b16 %v532, %v531
        %v542 = vpack.c.b16 %v534, %v533
        %551 = vmatprep.subr.bf16.mxu0 0
        %552 = vmatpush1.bf16.msra.mxu0 %v542
        %553 = vmatprep.subr.bf16.mxu0 0
        %554 = vmatpush1.bf16.msra.mxu0 %v541
        %555 = vmatprep.subr.bf16.mxu0 0
        %556 = vmatpush1.bf16.msra.mxu0 %v540
        %557 = vmatprep.subr.bf16.mxu0 0
        %558 = vmatpush1.bf16.msra.mxu0 %v539
        %559 = vmatprep.subr.bf16.mxu0 0
        %560 = vmatpush1.bf16.msra.mxu0 %v538
        %561 = vmatprep.subr.bf16.mxu0 0
        %562 = vmatpush1.bf16.msra.mxu0 %v537
        %563 = vmatprep.subr.bf16.mxu0 0
        %564 = vmatpush1.bf16.msra.mxu0 %v536
        %565 = vmatprep.subr.bf16.mxu0 0
        %566 = vmatpush1.bf16.msra.mxu0 %v535
        %567 = vmatprep.subr.bf16.mxu0 0
        %568 = vmatpush2.bf16.msra.mxu0 0
        %569 = vmatprep.subr.bf16.mxu0 0
        %570 = vmatpush2.bf16.msra.mxu0 0
        %571 = vmatprep.subr.bf16.mxu0 0
        %572 = vmatpush2.bf16.msra.mxu0 0
        %573 = vmatprep.subr.bf16.mxu0 0
        %574 = vmatpush2.bf16.msra.mxu0 0
        %575 = vmatprep.subr.bf16.mxu0 0
        %576 = vmatpush2.bf16.msra.mxu0 0
        %577 = vmatprep.subr.bf16.mxu0 0
        %578 = vmatpush2.bf16.msra.mxu0 0
        %579 = vmatprep.subr.bf16.mxu0 0
        %580 = vmatpush2.bf16.msra.mxu0 0
        %581 = vmatprep.subr.bf16.mxu0 0
        %582 = vmatpush2.bf16.msra.mxu0 0
        %583 = vmatprep.mubr.bf16.mxu0 0
        %584 = vmatmul.mubr.bf16.gmra.mxu0 %v420
        %v585 = vpop.f32.mrf.mxu0
        %v586 = vadd.f32 0.0, %v585
        %v587 = vpop.f32.mrf.mxu0
        %v588 = vpop.f32.mrf.mxu0
        %v589 = vadd.f32 0.0, %v588
        %v590 = vpop.f32.mrf.mxu0
        %591 = vmatprep.mubr.bf16.mxu0 0
        %592 = vmatmul.mubr.bf16.gmra.mxu0 %v421
        %v593 = vpop.f32.mrf.mxu0
        %v594 = vadd.f32 0.0, %v593
        %v595 = vpop.f32.mrf.mxu0
        %v596 = vpop.f32.mrf.mxu0
        %v597 = vadd.f32 0.0, %v596
        %v598 = vpop.f32.mrf.mxu0
        %599 = vdwg.mxu0
        %v600 = vpack.c.bf16 %v589, %v586
        %v601 = vpack.c.bf16 %v597, %v594
        %v602 = vld [vmem:[%s367] sm:$0xff]
        %v603 = vld [vmem:[%s367 + $0x8] sm:$0xff]
        %v604 = vld [vmem:[%s367 + $0x10] sm:$0xff]
        %v605 = vld [vmem:[%s367 + $0x18] sm:$0xff]
        %v606 = vsel %vm392, %v486, 0
        %v609 = vsel %vm392, %v600, 0
        %v612 = vsel %vm392, %v601, 0
        %614 = vmatprep.subr.bf16.mxu0 0
        %615 = vmatpush1.bf16.xpose.msra.mxu0 0
        %616 = vmatprep.subr.bf16.mxu0 0
        %617 = vmatpush1.bf16.xpose.msra.mxu0 0
        %618 = vmatprep.subr.bf16.mxu0 0
        %619 = vmatpush1.bf16.xpose.msra.mxu0 0
        %620 = vmatprep.subr.bf16.mxu0 0
        %621 = vmatpush1.bf16.xpose.msra.mxu0 0
        %622 = vmatprep.subr.bf16.mxu0 0
        %623 = vmatpush1.bf16.xpose.msra.mxu0 0
        %624 = vmatprep.subr.bf16.mxu0 0
        %625 = vmatpush1.bf16.xpose.msra.mxu0 0
        %626 = vmatprep.subr.bf16.mxu0 0
        %627 = vmatpush1.bf16.xpose.msra.mxu0 %v612
        %628 = vmatprep.subr.bf16.mxu0 0
        %629 = vmatpush1.bf16.xpose.msra.mxu0 %v609
        %630 = vmatprep.subr.bf16.mxu0 0
        %631 = vmatpush2.bf16.xpose.msra.mxu0 0
        %632 = vmatprep.subr.bf16.mxu0 0
        %633 = vmatpush2.bf16.xpose.msra.mxu0 0
        %634 = vmatprep.subr.bf16.mxu0 0
        %635 = vmatpush2.bf16.xpose.msra.mxu0 0
        %636 = vmatprep.subr.bf16.mxu0 0
        %637 = vmatpush2.bf16.xpose.msra.mxu0 0
        %638 = vmatprep.subr.bf16.mxu0 0
        %639 = vmatpush2.bf16.xpose.msra.mxu0 0
        %640 = vmatprep.subr.bf16.mxu0 0
        %641 = vmatpush2.bf16.xpose.msra.mxu0 0
        %642 = vmatprep.subr.bf16.mxu0 0
        %643 = vmatpush2.bf16.xpose.msra.mxu0 0
        %644 = vmatprep.subr.bf16.mxu0 0
        %645 = vmatpush2.bf16.xpose.msra.mxu0 0
        %646 = vmatprep.mubr.bf16.mxu0 0
        %647 = vmatmul.mubr.bf16.gmra.mxu0 %v606
        %v648 = vpop.f32.mrf.mxu0
        %v649 = vadd.f32 %v602, %v648
        %v650 = vpop.f32.mrf.mxu0
        %v651 = vpop.f32.mrf.mxu0
        %v652 = vadd.f32 %v603, %v651
        %v653 = vpop.f32.mrf.mxu0
        %654 = vmatprep.mubr.bf16.mxu0 0
        %655 = vmatmul.mubr.bf16.gmra.mxu0 %v606
        %v656 = vpop.f32.mrf.mxu0
        %v657 = vadd.f32 %v604, %v656
        %v658 = vpop.f32.mrf.mxu0
        %v659 = vpop.f32.mrf.mxu0
        %v660 = vadd.f32 %v605, %v659
        %v661 = vpop.f32.mrf.mxu0
        %662 = vdwg.mxu0
        %v663 = vsel %vm388, %v649, -inf
        %664 = vmax.xlane.f32.xlu0 %v663
        %v665 = vpop.xlane.xlu0 %664
        %v666 = vsel %vm388, %v652, -inf
        %667 = vmax.xlane.f32.xlu0 %v666
        %v668 = vpop.xlane.xlu0 %667
        %v669 = vsel %vm388, %v657, -inf
        %670 = vmax.xlane.f32.xlu0 %v669
        %v671 = vpop.xlane.xlu0 %670
        %v672 = vsel %vm388, %v660, -inf
        %673 = vmax.xlane.f32.xlu0 %v672
        %v674 = vpop.xlane.xlu0 %673
        %v675 = vsub.f32 %v649, %v665
        %v676 = vsub.f32 %v652, %v668
        %v677 = vsub.f32 %v657, %v671
        %v678 = vsub.f32 %v660, %v674
        %v679 = vmul.f32 %v675, 1.442695
        %v680 = vpow.pop %v679
        %v681 = vmul.f32 %v676, 1.442695
        %v682 = vpow.pop %v681
        %v683 = vmul.f32 %v677, 1.442695
        %v684 = vpow.pop %v683
        %v685 = vmul.f32 %v678, 1.442695
        %v686 = vpow.pop %v685
        %v687 = vsel %vm388, %v680, 0.0
        %688 = vadd.xlane.f32.xlu0 %v687
        %v689 = vpop.xlane.xlu0 %688
        %v690 = vsel %vm388, %v682, 0.0
        %691 = vadd.xlane.f32.xlu0 %v690
        %v692 = vpop.xlane.xlu0 %691
        %v693 = vsel %vm388, %v684, 0.0
        %694 = vadd.xlane.f32.xlu0 %v693
        %v695 = vpop.xlane.xlu0 %694
        %v696 = vsel %vm388, %v686, 0.0
        %697 = vadd.xlane.f32.xlu0 %v696
        %v698 = vpop.xlane.xlu0 %697
        %v699 = vrcp.pop %v689
        %v700 = vrcp.pop %v692
        %v701 = vrcp.pop %v695
        %v702 = vrcp.pop %v698
        %v703 = vmul.f32 %v680, %v699
        %v704 = vmul.f32 %v682, %v700
        %v705 = vmul.f32 %v684, %v701
        %v706 = vmul.f32 %v686, %v702
        %707 = vst.msk [vmem:[%s362] sm:$0xff] %vm388, %v703
        %708 = vst.msk [vmem:[%s362 + $0x8] sm:$0xff] %vm388, %v704
        %709 = vst.msk [vmem:[%s362 + $0x10] sm:$0xff] %vm388, %v705
        %710 = vst.msk [vmem:[%s362 + $0x18] sm:$0xff] %vm388, %v706
        %v711 = vld [vmem:[%s6] sm:$0xf]
        %v712 = vld [vmem:[%s6 + $0x4] sm:$0xf]
        %v713 = vld [vmem:[%s6 + $0x8] sm:$0xf]
        %v714 = vld [vmem:[%s6 + $0xc] sm:$0xf]
        %v715 = vld [vmem:[%s6 + $0x10] sm:$0xf]
        %v716 = vld [vmem:[%s6 + $0x14] sm:$0xf]
        %v717 = vld [vmem:[%s6 + $0x18] sm:$0xf]
        %v718 = vld [vmem:[%s6 + $0x1c] sm:$0xf]
        %v719 = vld [vmem:[%s6 + $0x20] sm:$0xf]
        %v720 = vld [vmem:[%s6 + $0x24] sm:$0xf]
        %v721 = vld [vmem:[%s6 + $0x28] sm:$0xf]
        %v722 = vld [vmem:[%s6 + $0x2c] sm:$0xf]
        %v723 = vld [vmem:[%s6 + $0x30] sm:$0xf]
        %v724 = vld [vmem:[%s6 + $0x34] sm:$0xf]
        %v725 = vld [vmem:[%s6 + $0x38] sm:$0xf]
        %v726 = vld [vmem:[%s6 + $0x3c] sm:$0xf]
        %v743 = vunpack.c.l.b16 %v711
        %v744 = vunpack.c.l.b16 %v712
        %v745 = vunpack.c.l.b16 %v713
        %v746 = vunpack.c.l.b16 %v714
        %v747 = vunpack.c.l.b16 %v715
        %v748 = vunpack.c.l.b16 %v716
        %v749 = vunpack.c.l.b16 %v717
        %v750 = vunpack.c.l.b16 %v718
        %v751 = vunpack.c.l.b16 %v719
        %v752 = vunpack.c.l.b16 %v720
        %v753 = vunpack.c.l.b16 %v721
        %v754 = vunpack.c.l.b16 %v722
        %v755 = vunpack.c.l.b16 %v723
        %v756 = vunpack.c.l.b16 %v724
        %v757 = vunpack.c.l.b16 %v725
        %v758 = vunpack.c.l.b16 %v726
        %v759 = vpack.c.b16 %v744, %v743
        %v760 = vpack.c.b16 %v746, %v745
        %v761 = vpack.c.b16 %v748, %v747
        %v762 = vpack.c.b16 %v750, %v749
        %v763 = vpack.c.b16 %v752, %v751
        %v764 = vpack.c.b16 %v754, %v753
        %v765 = vpack.c.b16 %v756, %v755
        %v766 = vpack.c.b16 %v758, %v757
        %775 = vmatprep.subr.bf16.mxu0 0
        %776 = vmatpush1.bf16.msra.mxu0 %v766
        %777 = vmatprep.subr.bf16.mxu0 0
        %778 = vmatpush1.bf16.msra.mxu0 %v765
        %779 = vmatprep.subr.bf16.mxu0 0
        %780 = vmatpush1.bf16.msra.mxu0 %v764
        %781 = vmatprep.subr.bf16.mxu0 0
        %782 = vmatpush1.bf16.msra.mxu0 %v763
        %783 = vmatprep.subr.bf16.mxu0 0
        %784 = vmatpush1.bf16.msra.mxu0 %v762
        %785 = vmatprep.subr.bf16.mxu0 0
        %786 = vmatpush1.bf16.msra.mxu0 %v761
        %787 = vmatprep.subr.bf16.mxu0 0
        %788 = vmatpush1.bf16.msra.mxu0 %v760
        %789 = vmatprep.subr.bf16.mxu0 0
        %790 = vmatpush1.bf16.msra.mxu0 %v759
        %791 = vmatprep.subr.bf16.mxu0 0
        %792 = vmatpush2.bf16.msra.mxu0 0
        %793 = vmatprep.subr.bf16.mxu0 0
        %794 = vmatpush2.bf16.msra.mxu0 0
        %795 = vmatprep.subr.bf16.mxu0 0
        %796 = vmatpush2.bf16.msra.mxu0 0
        %797 = vmatprep.subr.bf16.mxu0 0
        %798 = vmatpush2.bf16.msra.mxu0 0
        %799 = vmatprep.subr.bf16.mxu0 0
        %800 = vmatpush2.bf16.msra.mxu0 0
        %801 = vmatprep.subr.bf16.mxu0 0
        %802 = vmatpush2.bf16.msra.mxu0 0
        %803 = vmatprep.subr.bf16.mxu0 0
        %804 = vmatpush2.bf16.msra.mxu0 0
        %805 = vmatprep.subr.bf16.mxu0 0
        %806 = vmatpush2.bf16.msra.mxu0 0
        %807 = vmatprep.mubr.bf16.mxu0 0
        %808 = vmatmul.mubr.bf16.gmra.mxu0 %v420
        %v809 = vpop.f32.mrf.mxu0
        %v810 = vadd.f32 0.0, %v809
        %v811 = vpop.f32.mrf.mxu0
        %v812 = vpop.f32.mrf.mxu0
        %v813 = vadd.f32 0.0, %v812
        %v814 = vpop.f32.mrf.mxu0
        %815 = vmatprep.mubr.bf16.mxu0 0
        %816 = vmatmul.mubr.bf16.gmra.mxu0 %v421
        %v817 = vpop.f32.mrf.mxu0
        %v818 = vadd.f32 0.0, %v817
        %v819 = vpop.f32.mrf.mxu0
        %v820 = vpop.f32.mrf.mxu0
        %v821 = vadd.f32 0.0, %v820
        %v822 = vpop.f32.mrf.mxu0
        %823 = vdwg.mxu0
        %v824 = vpack.c.bf16 %v813, %v810
        %v825 = vpack.c.bf16 %v821, %v818
        %v826 = vpack.c.bf16 %v704, %v703
        %v827 = vpack.c.bf16 %v706, %v705
        %v829 = vsel %vm388, %v826, 0
        %v832 = vsel %vm388, %v827, 0
        %834 = vmatprep.subr.bf16.mxu0 0
        %835 = vmatpush1.bf16.msra.mxu0 0
        %836 = vmatprep.subr.bf16.mxu0 0
        %837 = vmatpush1.bf16.msra.mxu0 0
        %838 = vmatprep.subr.bf16.mxu0 0
        %839 = vmatpush1.bf16.msra.mxu0 0
        %840 = vmatprep.subr.bf16.mxu0 0
        %841 = vmatpush1.bf16.msra.mxu0 0
        %842 = vmatprep.subr.bf16.mxu0 0
        %843 = vmatpush1.bf16.msra.mxu0 0
        %844 = vmatprep.subr.bf16.mxu0 0
        %845 = vmatpush1.bf16.msra.mxu0 0
        %846 = vmatprep.subr.bf16.mxu0 0
        %847 = vmatpush1.bf16.msra.mxu0 %v825
        %848 = vmatprep.subr.bf16.mxu0 0
        %849 = vmatpush1.bf16.msra.mxu0 %v824
        %850 = vmatprep.subr.bf16.mxu0 0
        %851 = vmatpush2.bf16.msra.mxu0 0
        %852 = vmatprep.subr.bf16.mxu0 0
        %853 = vmatpush2.bf16.msra.mxu0 0
        %854 = vmatprep.subr.bf16.mxu0 0
        %855 = vmatpush2.bf16.msra.mxu0 0
        %856 = vmatprep.subr.bf16.mxu0 0
        %857 = vmatpush2.bf16.msra.mxu0 0
        %858 = vmatprep.subr.bf16.mxu0 0
        %859 = vmatpush2.bf16.msra.mxu0 0
        %860 = vmatprep.subr.bf16.mxu0 0
        %861 = vmatpush2.bf16.msra.mxu0 0
        %862 = vmatprep.subr.bf16.mxu0 0
        %863 = vmatpush2.bf16.msra.mxu0 0
        %864 = vmatprep.subr.bf16.mxu0 0
        %865 = vmatpush2.bf16.msra.mxu0 0
        %866 = vmatprep.mubr.bf16.mxu0 0
        %867 = vmatmul.mubr.bf16.gmra.mxu0 %v829
        %v868 = vpop.f32.mrf.mxu0
        %v869 = vadd.f32 0.0, %v868
        %v870 = vpop.f32.mrf.mxu0
        %v871 = vpop.f32.mrf.mxu0
        %v872 = vadd.f32 0.0, %v871
        %v873 = vpop.f32.mrf.mxu0
        %874 = vmatprep.mubr.bf16.mxu0 0
        %875 = vmatmul.mubr.bf16.gmra.mxu0 %v832
        %v876 = vpop.f32.mrf.mxu0
        %v877 = vadd.f32 0.0, %v876
        %v878 = vpop.f32.mrf.mxu0
        %v879 = vpop.f32.mrf.mxu0
        %v880 = vadd.f32 0.0, %v879
        %v881 = vpop.f32.mrf.mxu0
        %882 = vdwg.mxu0
        %v883 = vadd.f32 %v869, %v872
        %v884 = vadd.f32 %v883, %v877
        %v885 = vadd.f32 %v884, %v880
        %v886 = vld [vmem:[%s7] sm:$0x1]
        %v888 = vlaneseq
        %v889 = vshrl.u32 %v888, 7
        %v890 = vsub.s32 0, %v889
        %v891 = vrot.slane %v886, %v890
        %v893 = vadd.f32 %v885, %v891
        %894 = vst.msk [vmem:[%s355] sm:$0xff] %vm388, %v893
        %s895 = sand.u32 %s218, 1
        %s896 = scalar_lea.sflag [#allocation3], %s895
        %s897 = sand.u32 %s218, 1
        %s898 = smul.addr %s897, 8
        %s899 = scalar_lea.vmem [#allocation2], %s898
        %s900 = sand.u32 %s244, 1
        %s901 = scalar_lea.sflag [#allocation5], %s900
        %s902 = sand.u32 %s244, 1
        %s903 = smul.addr %s902, 32
        %s904 = scalar_lea.vmem [#allocation4], %s903
        // Predicated region
        $region53: #{tpu_custom_call.1} parent=51 // pred_check
          %p905 = pneg %p228
        $region54: #{tpu_custom_call.1} parent=51 // pred_check_branch
          %907 = sbr.rel (%p905) target = $region56
        $region55: #{tpu_custom_call.1} parent=51 // pred_region
          %s909 = ssub.s32 128, 128
          %910 = vsyncadd %s896, %s909
          %s911 = smul.addr %s27, 128
          %s912 = scalar_lea.hbm %s8, %s911
          %s914 = sshll.u32 %s899, 4
          %s915 = int_to_ptr.vmem [resolvable:$true] %s914
          %917 = dma.vmem_to_hbm [thread:$0]  %s915, 128, %s912, %s896
        $region56: #{tpu_custom_call.1} parent=51 // pred_fallthru
          _
        // Predicated region
        $region57: #{tpu_custom_call.1} parent=51 // pred_check
          %p918 = pneg %p254
        $region58: #{tpu_custom_call.1} parent=51 // pred_check_branch
          %920 = sbr.rel (%p918) target = $region60
        $region59: #{tpu_custom_call.1} parent=51 // pred_region
          %s922 = ssub.s32 512, 512
          %923 = vsyncadd %s901, %s922
          %s924 = smul.addr %s27, 4
          %s925 = smul.addr %s924, 128
          %s926 = scalar_lea.hbm %s9, %s925
          %s927 = sshll.u32 %s904, 4
          %s928 = int_to_ptr.vmem [resolvable:$true] %s927
          %933 = dma.vmem_to_hbm [thread:$0]  %s928, 512, %s926, %s901, 128, 128, 8
        $region60: #{tpu_custom_call.1} parent=51 // pred_fallthru
          _
      $region52: #{tpu_custom_call.1} parent=5 // pred_fallthru
        _
      %p934 = scmp.le.s32.totalorder 2, %s22
      // Predicated region
      $region61: #{tpu_custom_call.1} parent=5 // pred_check
        %p935 = pneg %p934
      $region62: #{tpu_custom_call.1} parent=5 // pred_check_branch
        %937 = sbr.rel (%p935) target = $region64
      $region63: #{tpu_custom_call.1} parent=5 // pred_region
        %s938 = ssub.s32 %s22, 2
        // Predicated region
        $region65: #{tpu_custom_call.1} parent=63 // pred_check
          %p939 = pneg %p234
        $region66: #{tpu_custom_call.1} parent=63 // pred_check_branch
          %941 = sbr.rel (%p939) target = $region68
        $region67: #{tpu_custom_call.1} parent=63 // pred_region
          %s942 = sand.u32 %s219, 1
          %s943 = scalar_lea.sflag [#allocation3], %s942
          %s944 = sand.u32 %s219, 1
          %s945 = smul.addr %s944, 8
          %s946 = scalar_lea.vmem [#allocation2], %s945
          %947 = dma.done %s943, 128
        $region68: #{tpu_custom_call.1} parent=63 // pred_fallthru
          _
        // Predicated region
        $region69: #{tpu_custom_call.1} parent=63 // pred_check
          %p948 = pneg %p260
        $region70: #{tpu_custom_call.1} parent=63 // pred_check_branch
          %950 = sbr.rel (%p948) target = $region72
        $region71: #{tpu_custom_call.1} parent=63 // pred_region
          %s951 = sand.u32 %s245, 1
          %s952 = scalar_lea.sflag [#allocation5], %s951
          %s953 = sand.u32 %s245, 1
          %s954 = smul.addr %s953, 32
          %s955 = scalar_lea.vmem [#allocation4], %s954
          %956 = dma.done %s952, 512
        $region72: #{tpu_custom_call.1} parent=63 // pred_fallthru
          _
      $region64: #{tpu_custom_call.1} parent=5 // pred_fallthru
        _
    $region6: #{tpu_custom_call.1} parent=1 // loop_footer
      %s26 = sadd.s32 1, %s22
    $region7: #{tpu_custom_call.1} parent=1 // loop_footer_branch
      %21 = sbr.rel target = $region3
    $region8: #{tpu_custom_call.1} parent=1 // loop_exit
      _
    %957 = vsyncpa [#allocation3], 1
    %s958 = scalar_lea.sflag [#allocation3], 1
    %959 = vsyncpa %s958, 1
    %960 = vsyncpa [#allocation5], 1
    %s961 = scalar_lea.sflag [#allocation5], 1
    %962 = vsyncpa %s961, 1

</llo_original>
